<compile_context>
chip_gen: v7x
topology: tpu7x:2x2x1
jax: 0.10.0
libtpu: 0.0.40
codegen_flags: <defaults>
</compile_context>

<pallas_src>
import jax
import jax.numpy as jnp
from jax.experimental import pallas as pl
from jax.experimental.pallas import tpu as pltpu


def _round_up(v, m):
    return ((v + m - 1) // m) * m


# ----------------------------------------------------------------------------
# Fast path: whole weight resident in VMEM, 1-D grid over batch tiles.
# ----------------------------------------------------------------------------
def _binarize_resident_kernel(x_ref, wt_ref, o_ref):
    # bf16 operands on the MXU, f32 accumulation, f32 sign compare.
    z = jnp.dot(
        x_ref[...].astype(jnp.bfloat16),
        wt_ref[...].astype(jnp.bfloat16),
        preferred_element_type=jnp.float32,
    )
    o_ref[...] = jnp.where(z > 0, 1.0, -1.0).astype(o_ref.dtype)


# ----------------------------------------------------------------------------
# General path: 3-D tiled grid with a f32 accumulator over the K axis.
# ----------------------------------------------------------------------------
def _binarize_tiled_kernel(x_ref, wt_ref, o_ref, acc_ref):
    @pl.when(pl.program_id(2) == 0)
    def _init():
        acc_ref[...] = jnp.zeros_like(acc_ref)

    acc_ref[...] += jnp.dot(
        x_ref[...].astype(jnp.bfloat16),
        wt_ref[...].astype(jnp.bfloat16),
        preferred_element_type=jnp.float32,
    )

    @pl.when(pl.program_id(2) == pl.num_programs(2) - 1)
    def _finalize():
        # binary(z) = 2*(z > 0) - 1  ->  +1 where z > 0, else -1 (z == 0 -> -1)
        o_ref[...] = jnp.where(acc_ref[...] > 0, 1.0, -1.0).astype(o_ref.dtype)


def binarization_layer(
    x,
    weight,
    *,
    tm=None,
    tn=512,
    tk=1024,
    max_resident_weight_bytes=4 * 1024 * 1024,
):
    """y = binary(x @ weight.T).

    x:      (B, hs_from)
    weight: (hs_to, hs_from)   -- PyTorch nn.Linear layout.
    Returns (B, hs_to) of +/-1 in x.dtype.
    """
    B, K = x.shape
    N, Kw = weight.shape
    assert K == Kw, "weight must be (hs_to, hs_from)"

    # One-time transpose to (hs_from, hs_to): the in-kernel dot is then plain
    # A @ B, so Mosaic never needs a per-tile XLU transpose of the weight tile.
    # For BinarizationLayer the weight is tiny, so this pass is negligible.
    wt = weight.T  # (K, N)

    weight_bytes = N * K * weight.dtype.itemsize

    # ---------------- Fast path: weight fully resident in VMEM ---------------
    if weight_bytes <= max_resident_weight_bytes:
        itemsize = x.dtype.itemsize
        out_itemsize = x.dtype.itemsize
        # Budget ~8 MiB for double-buffered x tiles + output tiles; the weight
        # (<= max_resident_weight_bytes, fetched once) fits comfortably beside it
        # under even v5e's 16 MiB default scoped VMEM.
        budget = 8 * 1024 * 1024
        per_row = 2 * K * itemsize + 2 * N * out_itemsize
        tm_cap = max(8, (budget // per_row) // 8 * 8)

        tm_eff = 512 if tm is None else tm
        tm_eff = max(8, _round_up(min(tm_eff, tm_cap, _round_up(B, 8)), 8))
        # v7x megacore: give the "parallel" batch axis >= 2 tiles when possible.
        if pl.cdiv(B, tm_eff) < 2 and B > 8:
            tm_eff = max(8, _round_up(pl.cdiv(B, 2), 8))

        grid = (pl.cdiv(B, tm_eff),)

        return pl.pallas_call(
            _binarize_resident_kernel,
            out_shape=jax.ShapeDtypeStruct((B, N), x.dtype),
            grid_spec=pltpu.PrefetchScalarGridSpec(
                num_scalar_prefetch=0,
                grid=grid,
                in_specs=[
                    # x tile: full K per block; partial B edge block is masked
                    # by Pallas (no wrapper pad / post-slice needed).
                    pl.BlockSpec((tm_eff, K), lambda i: (i, 0)),
                    # Whole weight, same block every step -> fetched once, resident.
                    pl.BlockSpec((K, N), lambda i: (0, 0)),
                ],
                out_specs=pl.BlockSpec((tm_eff, N), lambda i: (i, 0)),
            ),
            compiler_params=pltpu.CompilerParams(
                dimension_semantics=("parallel",),
            ),
        )(x, wt)

    # ---------------- General path: tiled 3-D grid with K reduction ----------
    tm_eff = 256 if tm is None else tm
    tm_eff = max(8, min(_round_up(tm_eff, 8), _round_up(B, 8)))
    tn_eff = max(128, min(_round_up(tn, 128), _round_up(N, 128)))
    tk_eff = max(128, min(_round_up(tk, 128), _round_up(K, 128)))

    # Only the contraction axis needs exact zero padding (garbage in K would mix
    # into valid outputs).  Edge tiles along B / N are masked by Pallas, so the
    # output never needs a post-slice.
    Kp = _round_up(K, tk_eff)
    xp = x if Kp == K else jnp.pad(x, ((0, 0), (0, Kp - K)))
    wtp = wt if Kp == K else jnp.pad(wt, ((0, Kp - K), (0, 0)))

    grid = (pl.cdiv(B, tm_eff), pl.cdiv(N, tn_eff), Kp // tk_eff)

    return pl.pallas_call(
        _binarize_tiled_kernel,
        out_shape=jax.ShapeDtypeStruct((B, N), x.dtype),
        grid_spec=pltpu.PrefetchScalarGridSpec(
            num_scalar_prefetch=0,
            grid=grid,
            in_specs=[
                pl.BlockSpec((tm_eff, tk_eff), lambda i, j, k: (i, k)),   # x tile
                pl.BlockSpec((tk_eff, tn_eff), lambda i, j, k: (k, j)),   # W.T tile
            ],
            out_specs=pl.BlockSpec((tm_eff, tn_eff), lambda i, j, k: (i, j)),
            scratch_shapes=[pltpu.VMEM((tm_eff, tn_eff), jnp.float32)],
        ),
        compiler_params=pltpu.CompilerParams(
            # B / hs_to tiles are independent -> shard across v7x's two
            # TensorCores; K is a reduction -> "arbitrary" and last.
            dimension_semantics=("parallel", "parallel", "arbitrary"),
        ),
    )(xp, wtp)


def _reference_logits(x, weight):
    # Same operand precision as the kernel (bf16 operands, f32 accumulation) so
    # only accumulation-order differences remain.
    return jnp.dot(
        x.astype(jnp.bfloat16),
        weight.T.astype(jnp.bfloat16),
        preferred_element_type=jnp.float32,
    )


def _check(out, x, weight, tie_tol):
    y = _reference_logits(x, weight)
    ref = jnp.where(y > 0, 1.0, -1.0).astype(out.dtype)
    # Signs must match except in a tiny tie region around 0, where differing
    # accumulation orders may legitimately flip the sign.
    ok = jnp.all((out == ref) | (jnp.abs(y) < tie_tol))
    assert bool(ok)


if __name__ == "__main__":
    key = jax.random.PRNGKey(0)
    k_x1, k_w1, k_x2, k_w2, k_x3, k_w3 = jax.random.split(key, 6)

    # --- Test 1: module-sized shapes (batch=8, hs_from=32 -> hs_to=48) -------
    # Exercises the resident-weight fast path with a single batch tile.
    B1, K1, N1 = 8, 32, 48
    x1 = jax.random.normal(k_x1, (B1, K1), dtype=jnp.float32)
    bound1 = 1.0 / (K1 ** 0.5)   # nn.Linear default init range
    w1 = jax.random.uniform(k_w1, (N1, K1), dtype=jnp.float32,
                            minval=-bound1, maxval=bound1)
    out1 = jax.block_until_ready(binarization_layer(x1, w1))
    assert out1.shape == (B1, N1)
    _check(out1, x1, w1, tie_tol=1e-3)

    # --- Test 2: general tiled path (forced), non-multiple shapes ------------
    # Exercises the 3-D grid, f32 accumulator, K zero-padding and B/N edge tiles.
    B2, K2, N2 = 96, 320, 200
    x2 = jax.random.normal(k_x2, (B2, K2), dtype=jnp.float32)
    bound2 = 1.0 / (K2 ** 0.5)
    w2 = jax.random.uniform(k_w2, (N2, K2), dtype=jnp.float32,
                            minval=-bound2, maxval=bound2)
    out2 = jax.block_until_ready(
        binarization_layer(x2, w2, tm=64, tn=128, tk=128,
                           max_resident_weight_bytes=0)  # force tiled path
    )
    assert out2.shape == (B2, N2)
    _check(out2, x2, w2, tie_tol=1e-3)

    # --- Test 3: fast path with multiple batch tiles (megacore-friendly) -----
    B3, K3, N3 = 1024, 256, 256
    x3 = jax.random.normal(k_x3, (B3, K3), dtype=jnp.float32)
    bound3 = 1.0 / (K3 ** 0.5)
    w3 = jax.random.uniform(k_w3, (N3, K3), dtype=jnp.float32,
                            minval=-bound3, maxval=bound3)
    out3 = jax.block_until_ready(binarization_layer(x3, w3))
    assert out3.shape == (B3, N3)
    _check(out3, x3, w3, tie_tol=1e-3)

    print("KERNEL_OK")
</pallas_src>

<mosaic_0001>
module attributes {stable_mosaic.version = 11 : i64} {
  func.func @_binarize_resident_kernel(%arg0: i32, %arg1: memref<8x32xf32, #tpu.memory_space<vmem>>, %arg2: memref<32x48xf32, #tpu.memory_space<vmem>>, %arg3: memref<8x48xf32, #tpu.memory_space<vmem>>) attributes {dimension_semantics = [#tpu.dimension_semantics<parallel>], iteration_bounds = array<i64: 1>, scalar_prefetch = 0 : i64, scratch_operands = 0 : i64, tpu.core_type = #tpu.core_type<tc>, window_params = [{transform_indices = @transform_0, window_bounds = array<i64: 8, 32>}, {pipeline_mode = #tpu.pipeline_mode<synchronous>, transform_indices = @transform_1, window_bounds = array<i64: 32, 48>}, {transform_indices = @transform_2, window_bounds = array<i64: 8, 48>}]} {
    %c0 = arith.constant 0 : index
    %c0_0 = arith.constant 0 : index
    %0 = vector.load %arg1[%c0, %c0_0] : memref<8x32xf32, #tpu.memory_space<vmem>>, vector<8x32xf32>
    %1 = arith.truncf %0 : vector<8x32xf32> to vector<8x32xbf16>
    %c0_1 = arith.constant 0 : index
    %c0_2 = arith.constant 0 : index
    %2 = vector.load %arg2[%c0_1, %c0_2] : memref<32x48xf32, #tpu.memory_space<vmem>>, vector<32x48xf32>
    %3 = arith.truncf %2 : vector<32x48xf32> to vector<32x48xbf16>
    %cst = arith.constant dense<0.000000e+00> : vector<8x48xf32>
    %4 = tpu.matmul %1, %3, %cst {dimension_numbers = #tpu.dot_dimension_numbers<[1], [0], [0], [1], [0, 0, 1, 1], [], []>} : vector<8x32xbf16>, vector<32x48xbf16>, vector<8x48xf32> -> vector<8x48xf32>
    %cst_3 = arith.constant 0.000000e+00 : f32
    %5 = vector.broadcast %cst_3 : f32 to vector<8x48xf32>
    %6 = arith.cmpf ogt, %4, %5 : vector<8x48xf32>
    %cst_4 = arith.constant 1.000000e+00 : f32
    %cst_5 = arith.constant -1.000000e+00 : f32
    %7 = vector.broadcast %cst_4 : f32 to vector<8x48xf32>
    %8 = vector.broadcast %cst_5 : f32 to vector<8x48xf32>
    %9 = arith.select %6, %7, %8 : vector<8x48xi1>, vector<8x48xf32>
    %c0_6 = arith.constant 0 : index
    %c0_7 = arith.constant 0 : index
    %10 = vector.load %arg3[%c0_6, %c0_7] : memref<8x48xf32, #tpu.memory_space<vmem>>, vector<8x48xf32>
    tpu.vector_store %arg3[%c0_6, %c0_7], %9 {strides = array<i32>} : memref<8x48xf32, #tpu.memory_space<vmem>>, vector<8x48xf32>,
    return
  }
  func.func @transform_0(%arg0: i32) -> (i32, i32) {
    %c0_i32 = arith.constant 0 : i32
    %c0_i32_0 = arith.constant 0 : i32
    return %arg0, %c0_i32 : i32, i32
  }
  func.func @transform_1(%arg0: i32) -> (i32, i32) {
    %c0_i32 = arith.constant 0 : i32
    %c0_i32_0 = arith.constant 0 : i32
    %c0_i32_1 = arith.constant 0 : i32
    return %c0_i32, %c0_i32_0 : i32, i32
  }
  func.func @transform_2(%arg0: i32) -> (i32, i32) {
    %c0_i32 = arith.constant 0 : i32
    %c0_i32_0 = arith.constant 0 : i32
    return %arg0, %c0_i32 : i32, i32
  }
}

</mosaic_0001>

<llo_original>
// kernel: tpu_custom_call.1
$region0: #{tpu_custom_call.1}
  #allocation0 [shape = 'u32[]', space=smem, size = 0x4, offset = 0x4, fixed_abs, tag = 'smem constant byte address 0x4 - core index']
  #allocation1 [shape = 'u32[144,128]{1,0:T(1,128)}', space=vmem, size = 0x12000, scoped, tag = 'internal scratch']
  %s0 = inlined_call_operand.hbm [shape: f32[8,32], index: 0, kind: input, shape index: {}]
  %s1 = inlined_call_operand.hbm [shape: f32[32,48], index: 1, kind: input, shape index: {}]
  %s2 = inlined_call_operand.hbm [shape: f32[8,48], index: 2, kind: output, shape index: {}]
  %s3 = sld [smem:[#allocation0]]
  $region26: #{tpu_custom_call.1} parent=0
    _
  %s5 = ssub.s32 1, %s3
  %s6 = scalar_select 0, %s5, %s3
  $region1: #{tpu_custom_call.1} parent=0
    #allocation2 [shape = 'u8[4096]{0}', space=vmem, size = 0x1000, scoped, tag = 'input window, operand 0, single buffered']
    #allocation3 [shape = 's32[1]{0}', space=sflag, size = 0x4, scoped, tag = 'scoped memory for tpu_custom_call.1']
    #allocation4 [shape = 's32[1]{0}', space=sflag, size = 0x4, scoped, tag = 'scoped memory for tpu_custom_call.1']
    #allocation5 [shape = 'u8[16384]{0}', space=vmem, size = 0x4000, scoped, tag = 'input window, operand 1, single buffered']
    #allocation6 [shape = 's32[1]{0}', space=sflag, size = 0x4, scoped, tag = 'scoped memory for tpu_custom_call.1']
    #allocation7 [shape = 'u8[4096]{0}', space=vmem, size = 0x1000, scoped, tag = 'output window, operand 0, single buffered']
    %7 = vsyncpa [#allocation3], 0
    %8 = vsyncpa [#allocation6], 0
    %9 = vsyncpa [#allocation4], 0
    // Predicated region
    $region2: #{tpu_custom_call.1} parent=1 // pred_check
      _
    $region3: #{tpu_custom_call.1} parent=1 // pred_check_branch
      %11 = sbr.rel (0) target = $region5
    $region4: #{tpu_custom_call.1} parent=1 // pred_region
      %s13 = ssub.s32 128, 128
      %14 = vsyncadd [#allocation3], %s13
      %s16 = sshll.u32 [#allocation2], 4
      %s17 = int_to_ptr.vmem [resolvable:$true] %s16
      %19 = dma.hbm_to_vmem [thread:$0]  %s0, 128, %s17, [#allocation3]
    $region5: #{tpu_custom_call.1} parent=1 // pred_fallthru
      _
    // Predicated region
    $region6: #{tpu_custom_call.1} parent=1 // pred_check
      _
    $region7: #{tpu_custom_call.1} parent=1 // pred_check_branch
      %21 = sbr.rel (0) target = $region9
    $region8: #{tpu_custom_call.1} parent=1 // pred_region
      %s23 = ssub.s32 512, 512
      %24 = vsyncadd [#allocation6], %s23
      %s25 = sshll.u32 [#allocation5], 4
      %s26 = int_to_ptr.vmem [resolvable:$true] %s25
      %31 = dma.hbm_to_vmem [thread:$0]  %s1, 512, %s26, [#allocation6], 128, 128, 8
    $region9: #{tpu_custom_call.1} parent=1 // pred_fallthru
      _
    // Predicated region
    $region10: #{tpu_custom_call.1} parent=1 // pred_check
      _
    $region11: #{tpu_custom_call.1} parent=1 // pred_check_branch
      %33 = sbr.rel (0) target = $region13
    $region12: #{tpu_custom_call.1} parent=1 // pred_region
      %34 = dma.done [#allocation3], 128
    $region13: #{tpu_custom_call.1} parent=1 // pred_fallthru
      _
    // Predicated region
    $region14: #{tpu_custom_call.1} parent=1 // pred_check
      _
    $region15: #{tpu_custom_call.1} parent=1 // pred_check_branch
      %36 = sbr.rel (0) target = $region17
    $region16: #{tpu_custom_call.1} parent=1 // pred_region
      %37 = dma.done [#allocation6], 512
    $region17: #{tpu_custom_call.1} parent=1 // pred_fallthru
      _
    %v39 = vld [vmem:[#allocation2] sm:$0xff]
    %v40 = vpack.c.bf16 %v39, %v39
    %v41 = vld [vmem:[#allocation5] sm:$0xff]
    %v42 = vld [vmem:[#allocation5 + $0x8] sm:$0xff]
    %v43 = vld [vmem:[#allocation5 + $0x10] sm:$0xff]
    %v44 = vld [vmem:[#allocation5 + $0x18] sm:$0xff]
    %v45 = vpack.c.bf16 %v42, %v41
    %v46 = vpack.c.bf16 %v44, %v43
    %vm47 = vcmask 261120
    %v49 = vsel %vm47, %v40, 0
    %51 = vmatprep.subr.bf16.mxu0 0
    %52 = vmatpush1.bf16.msra.mxu0 %v45
    %53 = vmatprep.subr.bf16.mxu0 0
    %54 = vmatpush1.bf16.msra.mxu0 %v46
    %55 = vmatprep.subr.bf16.mxu0 0
    %56 = vmatpush1.bf16.msra.mxu0 0
    %57 = vmatprep.subr.bf16.mxu0 0
    %58 = vmatpush1.bf16.msra.mxu0 0
    %59 = vmatprep.subr.bf16.mxu0 0
    %60 = vmatpush1.bf16.msra.mxu0 0
    %61 = vmatprep.subr.bf16.mxu0 0
    %62 = vmatpush1.bf16.msra.mxu0 0
    %63 = vmatprep.subr.bf16.mxu0 0
    %64 = vmatpush1.bf16.msra.mxu0 0
    %65 = vmatprep.subr.bf16.mxu0 0
    %66 = vmatpush1.bf16.msra.mxu0 0
    %67 = vmatprep.subr.bf16.mxu0 0
    %68 = vmatpush1.bf16.msra.mxu0 0
    %69 = vmatprep.subr.bf16.mxu0 0
    %70 = vmatpush1.bf16.msra.mxu0 0
    %71 = vmatprep.subr.bf16.mxu0 0
    %72 = vmatpush1.bf16.msra.mxu0 0
    %73 = vmatprep.subr.bf16.mxu0 0
    %74 = vmatpush1.bf16.msra.mxu0 0
    %75 = vmatprep.subr.bf16.mxu0 0
    %76 = vmatpush1.bf16.msra.mxu0 0
    %77 = vmatprep.subr.bf16.mxu0 0
    %78 = vmatpush1.bf16.msra.mxu0 0
    %79 = vmatprep.subr.bf16.mxu0 0
    %80 = vmatpush1.bf16.msra.mxu0 0
    %81 = vmatprep.subr.bf16.mxu0 0
    %82 = vmatpush1.bf16.msra.mxu0 0
    %83 = vmatprep.mubr.bf16.mxu0 0
    %84 = vmatmul.mubr.bf16.gmra.mrb[0].mxu0 %v49
    %v85 = vpop.f32.mrb[0].mxu0
    %v86 = vadd.f32 0.0, %v85
    %v87 = vpop.f32.mrb[0].mxu0
    %v88 = vpop.f32.mrb[0].mxu0
    %v89 = vpop.f32.mrb[0].mxu0
    %90 = vdwg.mxu0
    %vm91 = vcmp.gt.f32.partialorder %v86, 0.0
    %v92 = vsel %vm91, 1.0, -1.0
    %vm93 = vcmask 392192
    %94 = vst.msk [vmem:[#allocation7] sm:$0xff] %vm93, %v92
    // Predicated region
    $region18: #{tpu_custom_call.1} parent=1 // pred_check
      _
    $region19: #{tpu_custom_call.1} parent=1 // pred_check_branch
      %96 = sbr.rel (0) target = $region21
    $region20: #{tpu_custom_call.1} parent=1 // pred_region
      %s98 = ssub.s32 128, 128
      %99 = vsyncadd [#allocation4], %s98
      %s101 = sshll.u32 [#allocation7], 4
      %s102 = int_to_ptr.vmem [resolvable:$true] %s101
      %104 = dma.vmem_to_hbm [thread:$0]  %s102, 128, %s2, [#allocation4]
    $region21: #{tpu_custom_call.1} parent=1 // pred_fallthru
      _
    // Predicated region
    $region22: #{tpu_custom_call.1} parent=1 // pred_check
      _
    $region23: #{tpu_custom_call.1} parent=1 // pred_check_branch
      %106 = sbr.rel (0) target = $region25
    $region24: #{tpu_custom_call.1} parent=1 // pred_region
      %107 = dma.done [#allocation4], 128
    $region25: #{tpu_custom_call.1} parent=1 // pred_fallthru
      _
    %108 = vsyncpa [#allocation3], 1
    %109 = vsyncpa [#allocation6], 1
    %110 = vsyncpa [#allocation4], 1

</llo_original>
